<compile_context>
chip_gen: v5e
topology: v5e:2x2
jax: 0.10.0
libtpu: 0.0.40
codegen_flags: <defaults>
</compile_context>

<pallas_src>
import functools

import jax
import jax.numpy as jnp
from jax.experimental import pallas as pl
from jax.experimental.pallas import tpu as pltpu

_MAX_TILE_B = 1024      # upper bound on batch rows per grid step
_TARGET_STEPS = 4       # aim for >=4 grid steps (pipelining + v7x megacore)


def _round_up(x, m):
    return (x + m - 1) // m * m


def _actor_kernel(*refs, a_dim, has_mask):
    if has_mask:
        (x_ref, w1_ref, b1_ref, w2_ref, b2_ref, w3_ref, b3_ref, mask_ref,
         logits_ref, logp_ref) = refs
    else:
        (x_ref, w1_ref, b1_ref, w2_ref, b2_ref, w3_ref, b3_ref,
         logits_ref, logp_ref) = refs
        mask_ref = None

    # fc1 + ReLU: cast streamed f32 state to bf16 in-kernel (hidden under the
    # DMA/MXU), accumulate in f32 on the MXU, ReLU on the VPU in f32.
    x = x_ref[...].astype(jnp.bfloat16)
    h1 = jnp.dot(x, w1_ref[...],
                 preferred_element_type=jnp.float32) + b1_ref[...]
    h1 = jnp.maximum(h1, 0.0).astype(jnp.bfloat16)

    # fc2 + ReLU
    h2 = jnp.dot(h1, w2_ref[...],
                 preferred_element_type=jnp.float32) + b2_ref[...]
    h2 = jnp.maximum(h2, 0.0).astype(jnp.bfloat16)

    # fc3 on a lane-padded (128-wide, zero-filled) weight block: keeps the MXU
    # shape friendly.  Everything downstream (bias, mask, logsumexp, stores)
    # runs at the true action width A, so only useful lanes ever hit HBM.
    logits_wide = jnp.dot(h2, w3_ref[...], preferred_element_type=jnp.float32)
    logits = logits_wide[:, :a_dim] + b3_ref[...]

    if has_mask:
        # Feasibility mask: log(mask + 1e-10) computed on the EUP in-kernel.
        logits = logits + jnp.log(mask_ref[...].astype(jnp.float32) + 1e-10)

    # Categorical(logits=...) normalization: log_probs = logits - logsumexp.
    m = jnp.max(logits, axis=-1, keepdims=True)
    lse = m + jnp.log(jnp.sum(jnp.exp(logits - m), axis=-1, keepdims=True))

    logits_ref[...] = logits
    logp_ref[...] = logits - lse


def prepare_actor_params(params):
    """One-time prep (call OUTSIDE jit): bf16 MXU weights, lane-padded fc3."""
    w1, b1, w2, b2, w3, b3 = params
    a = w3.shape[1]
    a_pad = _round_up(max(a, 128), 128)
    w3p = jnp.pad(w3, ((0, 0), (0, a_pad - a)))
    return (w1.astype(jnp.bfloat16), b1.astype(jnp.float32),
            w2.astype(jnp.bfloat16), b2.astype(jnp.float32),
            w3p.astype(jnp.bfloat16), b3.astype(jnp.float32))


@jax.jit
def actor_forward(state, prepared_params, feas_mask=None):
    """state: [B, state_dim] f32; feas_mask: [B, action_dim] (or None).

    Returns (logits, log_probs) of the Categorical distribution, both
    [B, action_dim] f32.
    """
    w1, b1, w2, b2, w3p, b3 = prepared_params
    B, S = state.shape
    H = w1.shape[1]
    A = b3.shape[1]          # true action width
    A_pad = w3p.shape[1]     # lane-padded fc3 width (multiple of 128)
    has_mask = feas_mask is not None

    # Batch tiling: multiple of 8 sublanes, target >= _TARGET_STEPS grid steps
    # so megacore sharding / pipelining kick in, capped for huge batches.
    tile_b = min(_MAX_TILE_B, max(8, _round_up(-(-B // _TARGET_STEPS), 8)))
    B_pad = _round_up(B, tile_b)
    grid = (B_pad // tile_b,)

    if B_pad != B:
        state = jnp.pad(state, ((0, B_pad - B), (0, 0)))

    def stream(cols):                  # tiles that move with the batch grid
        return pl.BlockSpec((tile_b, cols), lambda i: (i, 0))

    def resident(shape):               # VMEM-resident across all grid steps
        return pl.BlockSpec(shape, lambda i: (0, 0))

    inputs = [state, w1, b1, w2, b2, w3p, b3]
    in_specs = [
        stream(S),             # state tile (f32, cast to bf16 in-kernel)
        resident((S, H)),      # w1 (bf16)
        resident((1, H)),      # b1 (f32)
        resident((H, H)),      # w2 (bf16)
        resident((1, H)),      # b2 (f32)
        resident((H, A_pad)),  # w3 (bf16, lane-padded)
        resident((1, A)),      # b3 (f32, true width)
    ]
    if has_mask:
        mask = feas_mask.astype(jnp.float32)
        if B_pad != B:
            mask = jnp.pad(mask, ((0, B_pad - B), (0, 0)),
                           constant_values=1.0)
        inputs.append(mask)
        in_specs.append(stream(A))     # narrow [tile_b, A] mask tile

    flops = 2 * B_pad * (S * H + H * H + H * A_pad)
    transcendentals = B_pad * (2 * A + 1)
    bytes_accessed = (state.size * 4
                      + w1.size * 2 + w2.size * 2 + w3p.size * 2
                      + (b1.size + b2.size + b3.size) * 4
                      + (B_pad * A * 4 if has_mask else 0)
                      + 2 * B_pad * A * 4)

    kernel = functools.partial(_actor_kernel, a_dim=A, has_mask=has_mask)

    logits_p, logp_p = pl.pallas_call(
        kernel,
        out_shape=(jax.ShapeDtypeStruct((B_pad, A), jnp.float32),
                   jax.ShapeDtypeStruct((B_pad, A), jnp.float32)),
        grid=grid,
        in_specs=in_specs,
        out_specs=(stream(A), stream(A)),
        compiler_params=pltpu.CompilerParams(
            dimension_semantics=("parallel",)),
        cost_estimate=pl.CostEstimate(
            flops=flops,
            transcendentals=transcendentals,
            bytes_accessed=bytes_accessed),
    )(*inputs)

    if B_pad != B:
        logits_p = logits_p[:B]
        logp_p = logp_p[:B]
    return logits_p, logp_p


def init_actor_params(key, state_dim, action_dim, hidden=128):
    """Deterministic init mimicking PyTorch nn.Linear defaults (f32)."""
    ks = jax.random.split(key, 6)

    def linear(kw, kb, fan_in, fan_out):
        bound = 1.0 / jnp.sqrt(float(fan_in))
        w = jax.random.uniform(kw, (fan_in, fan_out), jnp.float32, -bound, bound)
        b = jax.random.uniform(kb, (1, fan_out), jnp.float32, -bound, bound)
        return w, b

    w1, b1 = linear(ks[0], ks[1], state_dim, hidden)
    w2, b2 = linear(ks[2], ks[3], hidden, hidden)
    w3, b3 = linear(ks[4], ks[5], hidden, action_dim)
    return (w1, b1, w2, b2, w3, b3)


def _reference_forward(state, params, feas_mask=None):
    """Plain-JAX f32 reference matching the PyTorch module semantics."""
    w1, b1, w2, b2, w3, b3 = params
    h1 = jnp.maximum(state @ w1 + b1, 0.0)
    h2 = jnp.maximum(h1 @ w2 + b2, 0.0)
    logits = h2 @ w3 + b3
    if feas_mask is not None:
        logits = logits + jnp.log(feas_mask + 1e-10)
    logp = logits - jax.scipy.special.logsumexp(logits, axis=-1, keepdims=True)
    return logits, logp


if __name__ == "__main__":
    key = jax.random.PRNGKey(0)
    k_param, k_state, k_mask = jax.random.split(key, 3)

    batch = 8          # small test batch (rows sit on sublanes)
    state_dim = 32     # Actor input dimension
    action_dim = 8     # Actor output (number of discrete actions)

    params = init_actor_params(k_param, state_dim, action_dim)
    prepared = prepare_actor_params(params)   # one-time bf16/pad prep

    state = jax.random.normal(k_state, (batch, state_dim), dtype=jnp.float32)
    feas_mask = (jax.random.uniform(k_mask, (batch, action_dim)) > 0.3
                 ).astype(jnp.float32)

    # Masked path
    logits, log_probs = actor_forward(state, prepared, feas_mask)
    jax.block_until_ready((logits, log_probs))
    # No-mask fast path (mask tensor omitted from the kernel entirely)
    logits_nm, logp_nm = actor_forward(state, prepared)
    jax.block_until_ready((logits_nm, logp_nm))

    # Sanity check against a plain-JAX f32 reference (kernel uses bf16 MXU
    # operands with f32 accumulation, hence the looser tolerance).
    ref_logits, ref_logp = _reference_forward(state, params, feas_mask)
    ref_logits_nm, ref_logp_nm = _reference_forward(state, params, None)

    assert logits.shape == (batch, action_dim)
    assert log_probs.shape == (batch, action_dim)
    assert jnp.allclose(logits, ref_logits, atol=5e-2, rtol=5e-2)
    assert jnp.allclose(log_probs, ref_logp, atol=5e-2, rtol=5e-2)
    assert jnp.allclose(logits_nm, ref_logits_nm, atol=5e-2, rtol=5e-2)
    assert jnp.allclose(logp_nm, ref_logp_nm, atol=5e-2, rtol=5e-2)
    # log-probs must normalize to ~1 on both paths.
    assert jnp.allclose(jnp.sum(jnp.exp(log_probs), axis=-1), 1.0, atol=1e-3)
    assert jnp.allclose(jnp.sum(jnp.exp(logp_nm), axis=-1), 1.0, atol=1e-3)

    print("KERNEL_OK")
</pallas_src>

<mosaic_0001>
module attributes {stable_mosaic.version = 11 : i64} {
  func.func @_actor_kernel(%arg0: i32, %arg1: memref<8x32xf32, #tpu.memory_space<vmem>>, %arg2: memref<32x128xbf16, #tpu.memory_space<vmem>>, %arg3: memref<1x128xf32, #tpu.memory_space<vmem>>, %arg4: memref<128x128xbf16, #tpu.memory_space<vmem>>, %arg5: memref<1x128xf32, #tpu.memory_space<vmem>>, %arg6: memref<128x128xbf16, #tpu.memory_space<vmem>>, %arg7: memref<1x8xf32, #tpu.memory_space<vmem>>, %arg8: memref<8x8xf32, #tpu.memory_space<vmem>>, %arg9: memref<8x8xf32, #tpu.memory_space<vmem>>, %arg10: memref<8x8xf32, #tpu.memory_space<vmem>>) attributes {dimension_semantics = [#tpu.dimension_semantics<parallel>], iteration_bounds = array<i64: 1>, scalar_prefetch = 0 : i64, scratch_operands = 0 : i64, tpu.core_type = #tpu.core_type<tc>, window_params = [{transform_indices = @transform_0, window_bounds = array<i64: 8, 32>}, {pipeline_mode = #tpu.pipeline_mode<synchronous>, transform_indices = @transform_1, window_bounds = array<i64: 32, 128>}, {pipeline_mode = #tpu.pipeline_mode<synchronous>, transform_indices = @transform_2, window_bounds = array<i64: 1, 128>}, {pipeline_mode = #tpu.pipeline_mode<synchronous>, transform_indices = @transform_3, window_bounds = array<i64: 128, 128>}, {pipeline_mode = #tpu.pipeline_mode<synchronous>, transform_indices = @transform_4, window_bounds = array<i64: 1, 128>}, {pipeline_mode = #tpu.pipeline_mode<synchronous>, transform_indices = @transform_5, window_bounds = array<i64: 128, 128>}, {pipeline_mode = #tpu.pipeline_mode<synchronous>, transform_indices = @transform_6, window_bounds = array<i64: 1, 8>}, {transform_indices = @transform_7, window_bounds = array<i64: 8, 8>}, {transform_indices = @transform_8, window_bounds = array<i64: 8, 8>}, {transform_indices = @transform_9, window_bounds = array<i64: 8, 8>}]} {
    %c0 = arith.constant 0 : index
    %c0_0 = arith.constant 0 : index
    %0 = vector.load %arg1[%c0, %c0_0] : memref<8x32xf32, #tpu.memory_space<vmem>>, vector<8x32xf32>
    %1 = arith.truncf %0 : vector<8x32xf32> to vector<8x32xbf16>
    %c0_1 = arith.constant 0 : index
    %c0_2 = arith.constant 0 : index
    %2 = vector.load %arg2[%c0_1, %c0_2] : memref<32x128xbf16, #tpu.memory_space<vmem>>, vector<32x128xbf16>
    %cst = arith.constant dense<0.000000e+00> : vector<8x128xf32>
    %3 = tpu.matmul %1, %2, %cst {dimension_numbers = #tpu.dot_dimension_numbers<[1], [0], [0], [1], [0, 0, 1, 1], [], []>} : vector<8x32xbf16>, vector<32x128xbf16>, vector<8x128xf32> -> vector<8x128xf32>
    %c0_3 = arith.constant 0 : index
    %c0_4 = arith.constant 0 : index
    %4 = vector.load %arg3[%c0_3, %c0_4] : memref<1x128xf32, #tpu.memory_space<vmem>>, vector<1x128xf32>
    %5 = vector.broadcast %4 : vector<1x128xf32> to vector<8x128xf32>
    %6 = arith.addf %3, %5 : vector<8x128xf32>
    %cst_5 = arith.constant 0.000000e+00 : f32
    %7 = vector.broadcast %cst_5 : f32 to vector<8x128xf32>
    %8 = arith.maximumf %6, %7 : vector<8x128xf32>
    %9 = arith.truncf %8 : vector<8x128xf32> to vector<8x128xbf16>
    %c0_6 = arith.constant 0 : index
    %c0_7 = arith.constant 0 : index
    %10 = vector.load %arg4[%c0_6, %c0_7] : memref<128x128xbf16, #tpu.memory_space<vmem>>, vector<128x128xbf16>
    %cst_8 = arith.constant dense<0.000000e+00> : vector<8x128xf32>
    %11 = tpu.matmul %9, %10, %cst_8 {dimension_numbers = #tpu.dot_dimension_numbers<[1], [0], [0], [1], [0, 0, 1, 1], [], []>} : vector<8x128xbf16>, vector<128x128xbf16>, vector<8x128xf32> -> vector<8x128xf32>
    %c0_9 = arith.constant 0 : index
    %c0_10 = arith.constant 0 : index
    %12 = vector.load %arg5[%c0_9, %c0_10] : memref<1x128xf32, #tpu.memory_space<vmem>>, vector<1x128xf32>
    %13 = vector.broadcast %12 : vector<1x128xf32> to vector<8x128xf32>
    %14 = arith.addf %11, %13 : vector<8x128xf32>
    %cst_11 = arith.constant 0.000000e+00 : f32
    %15 = vector.broadcast %cst_11 : f32 to vector<8x128xf32>
    %16 = arith.maximumf %14, %15 : vector<8x128xf32>
    %17 = arith.truncf %16 : vector<8x128xf32> to vector<8x128xbf16>
    %c0_12 = arith.constant 0 : index
    %c0_13 = arith.constant 0 : index
    %18 = vector.load %arg6[%c0_12, %c0_13] : memref<128x128xbf16, #tpu.memory_space<vmem>>, vector<128x128xbf16>
    %cst_14 = arith.constant dense<0.000000e+00> : vector<8x128xf32>
    %19 = tpu.matmul %17, %18, %cst_14 {dimension_numbers = #tpu.dot_dimension_numbers<[1], [0], [0], [1], [0, 0, 1, 1], [], []>} : vector<8x128xbf16>, vector<128x128xbf16>, vector<8x128xf32> -> vector<8x128xf32>
    %20 = vector.extract_strided_slice %19 {offsets = [0, 0], sizes = [8, 8], strides = [1, 1]} : vector<8x128xf32> to vector<8x8xf32>
    %c0_15 = arith.constant 0 : index
    %c0_16 = arith.constant 0 : index
    %21 = vector.load %arg7[%c0_15, %c0_16] : memref<1x8xf32, #tpu.memory_space<vmem>>, vector<1x8xf32>
    %22 = vector.broadcast %21 : vector<1x8xf32> to vector<8x8xf32>
    %23 = arith.addf %20, %22 : vector<8x8xf32>
    %c0_17 = arith.constant 0 : index
    %c0_18 = arith.constant 0 : index
    %24 = vector.load %arg8[%c0_17, %c0_18] : memref<8x8xf32, #tpu.memory_space<vmem>>, vector<8x8xf32>
    %cst_19 = arith.constant 1.000000e-10 : f32
    %25 = vector.broadcast %cst_19 : f32 to vector<8x8xf32>
    %26 = arith.addf %24, %25 : vector<8x8xf32>
    %27 = math.log %26 : vector<8x8xf32>
    %28 = arith.addf %23, %27 : vector<8x8xf32>
    %cst_20 = arith.constant dense<0xFF800000> : vector<8xf32>
    %29 = vector.multi_reduction <maximumf>, %28, %cst_20 [1] : vector<8x8xf32> to vector<8xf32>
    %30 = vector.shape_cast %29 : vector<8xf32> to vector<8x1xf32>
    %31 = vector.broadcast %30 : vector<8x1xf32> to vector<8x8xf32>
    %32 = arith.subf %28, %31 : vector<8x8xf32>
    %33 = math.exp %32 : vector<8x8xf32>
    %cst_21 = arith.constant dense<0.000000e+00> : vector<8xf32>
    %34 = vector.multi_reduction <add>, %33, %cst_21 [1] : vector<8x8xf32> to vector<8xf32>
    %35 = vector.shape_cast %34 : vector<8xf32> to vector<8x1xf32>
    %36 = math.log %35 : vector<8x1xf32>
    %37 = arith.addf %30, %36 : vector<8x1xf32>
    %c0_22 = arith.constant 0 : index
    %c0_23 = arith.constant 0 : index
    %38 = vector.load %arg9[%c0_22, %c0_23] : memref<8x8xf32, #tpu.memory_space<vmem>>, vector<8x8xf32>
    tpu.vector_store %arg9[%c0_22, %c0_23], %28 {strides = array<i32>} : memref<8x8xf32, #tpu.memory_space<vmem>>, vector<8x8xf32>,
    %39 = vector.broadcast %37 : vector<8x1xf32> to vector<8x8xf32>
    %40 = arith.subf %28, %39 : vector<8x8xf32>
    %c0_24 = arith.constant 0 : index
    %c0_25 = arith.constant 0 : index
    %41 = vector.load %arg10[%c0_24, %c0_25] : memref<8x8xf32, #tpu.memory_space<vmem>>, vector<8x8xf32>
    tpu.vector_store %arg10[%c0_24, %c0_25], %40 {strides = array<i32>} : memref<8x8xf32, #tpu.memory_space<vmem>>, vector<8x8xf32>,
    return
  }
  func.func @transform_0(%arg0: i32) -> (i32, i32) {
    %c0_i32 = arith.constant 0 : i32
    %c0_i32_0 = arith.constant 0 : i32
    return %arg0, %c0_i32 : i32, i32
  }
  func.func @transform_1(%arg0: i32) -> (i32, i32) {
    %c0_i32 = arith.constant 0 : i32
    %c0_i32_0 = arith.constant 0 : i32
    %c0_i32_1 = arith.constant 0 : i32
    return %c0_i32, %c0_i32_0 : i32, i32
  }
  func.func @transform_2(%arg0: i32) -> (i32, i32) {
    %c0_i32 = arith.constant 0 : i32
    %c0_i32_0 = arith.constant 0 : i32
    %c0_i32_1 = arith.constant 0 : i32
    return %c0_i32, %c0_i32_0 : i32, i32
  }
  func.func @transform_3(%arg0: i32) -> (i32, i32) {
    %c0_i32 = arith.constant 0 : i32
    %c0_i32_0 = arith.constant 0 : i32
    %c0_i32_1 = arith.constant 0 : i32
    return %c0_i32, %c0_i32_0 : i32, i32
  }
  func.func @transform_4(%arg0: i32) -> (i32, i32) {
    %c0_i32 = arith.constant 0 : i32
    %c0_i32_0 = arith.constant 0 : i32
    %c0_i32_1 = arith.constant 0 : i32
    return %c0_i32, %c0_i32_0 : i32, i32
  }
  func.func @transform_5(%arg0: i32) -> (i32, i32) {
    %c0_i32 = arith.constant 0 : i32
    %c0_i32_0 = arith.constant 0 : i32
    %c0_i32_1 = arith.constant 0 : i32
    return %c0_i32, %c0_i32_0 : i32, i32
  }
  func.func @transform_6(%arg0: i32) -> (i32, i32) {
    %c0_i32 = arith.constant 0 : i32
    %c0_i32_0 = arith.constant 0 : i32
    %c0_i32_1 = arith.constant 0 : i32
    return %c0_i32, %c0_i32_0 : i32, i32
  }
  func.func @transform_7(%arg0: i32) -> (i32, i32) {
    %c0_i32 = arith.constant 0 : i32
    %c0_i32_0 = arith.constant 0 : i32
    return %arg0, %c0_i32 : i32, i32
  }
  func.func @transform_8(%arg0: i32) -> (i32, i32) {
    %c0_i32 = arith.constant 0 : i32
    %c0_i32_0 = arith.constant 0 : i32
    return %arg0, %c0_i32 : i32, i32
  }
  func.func @transform_9(%arg0: i32) -> (i32, i32) {
    %c0_i32 = arith.constant 0 : i32
    %c0_i32_0 = arith.constant 0 : i32
    return %arg0, %c0_i32 : i32, i32
  }
}

</mosaic_0001>

<llo_original>
// kernel: actor_forward.1
$region0: #{actor_forward.1}
  #allocation0 [shape = 'u32[]', space=smem, size = 0x4, offset = 0x4, fixed_abs, tag = 'smem constant byte address 0x4 - core index']
  #allocation1 [shape = 'u32[72,128]{1,0:T(1,128)}', space=vmem, size = 0x9000, scoped, tag = 'internal scratch']
  %s0 = inlined_call_operand.hbm [shape: f32[8,32], index: 0, kind: input, shape index: {}]
  %s1 = inlined_call_operand.hbm [shape: bf16[32,128], index: 1, kind: input, shape index: {}]
  %s2 = inlined_call_operand.vmem [shape: f32[1,128], index: 2, kind: input, shape index: {}]
  %s3 = inlined_call_operand.hbm [shape: bf16[128,128], index: 3, kind: input, shape index: {}]
  %s4 = inlined_call_operand.vmem [shape: f32[1,128], index: 4, kind: input, shape index: {}]
  %s5 = inlined_call_operand.hbm [shape: bf16[128,128], index: 5, kind: input, shape index: {}]
  %s6 = inlined_call_operand.vmem [shape: f32[1,8], index: 6, kind: input, shape index: {}]
  %s7 = inlined_call_operand.hbm [shape: f32[8,8], index: 7, kind: input, shape index: {}]
  %s8 = inlined_call_operand.hbm [shape: f32[8,8], index: 8, kind: output, shape index: {0}]
  %s9 = inlined_call_operand.hbm [shape: f32[8,8], index: 9, kind: output, shape index: {1}]
  %10 = xla_tuple %s8, %s9
  %s11 = sld [smem:[#allocation0]]
  $region70: #{actor_forward.1} parent=0
    _
  %s13 = ssub.s32 1, %s11
  %s14 = scalar_select 0, %s13, %s11
  $region1: #{actor_forward.1} parent=0
    #allocation2 [shape = 'u8[4096]{0}', space=vmem, size = 0x1000, scoped, tag = 'input window, operand 0, single buffered']
    #allocation3 [shape = 's32[1]{0}', space=sflag, size = 0x4, scoped, tag = 'scoped memory for actor_forward.1']
    #allocation4 [shape = 's32[1]{0}', space=sflag, size = 0x4, scoped, tag = 'scoped memory for actor_forward.1']
    #allocation5 [shape = 'u8[8192]{0}', space=vmem, size = 0x2000, scoped, tag = 'input window, operand 1, single buffered']
    #allocation6 [shape = 's32[1]{0}', space=sflag, size = 0x4, scoped, tag = 'scoped memory for actor_forward.1']
    #allocation7 [shape = 'u8[32768]{0}', space=vmem, size = 0x8000, scoped, tag = 'input window, operand 3, single buffered']
    #allocation8 [shape = 'u8[32768]{0}', space=vmem, size = 0x8000, scoped, tag = 'input window, operand 5, single buffered']
    #allocation9 [shape = 's32[1]{0}', space=sflag, size = 0x4, scoped, tag = 'scoped memory for actor_forward.1']
    #allocation10 [shape = 'u8[4096]{0}', space=vmem, size = 0x1000, scoped, tag = 'input window, operand 7, single buffered']
    #allocation11 [shape = 'u8[4096]{0}', space=vmem, size = 0x1000, scoped, tag = 'output window, operand 0, single buffered']
    #allocation12 [shape = 'u8[4096]{0}', space=vmem, size = 0x1000, scoped, tag = 'output window, operand 1, single buffered']
    #allocation13 [shape = 's32[1]{0}', space=sflag, size = 0x4, scoped, tag = 'scoped memory for actor_forward.1']
    %15 = vsyncpa [#allocation3], 0
    %16 = vsyncpa [#allocation6], 0
    %17 = vsyncpa [#allocation9], 0
    %18 = vsyncpa [#allocation4], 0
    %19 = vsyncpa [#allocation13], 0
    // Predicated region
    $region2: #{actor_forward.1} parent=1 // pred_check
      _
    $region3: #{actor_forward.1} parent=1 // pred_check_branch
      %21 = sbr.rel (0) target = $region5
    $region4: #{actor_forward.1} parent=1 // pred_region
      %23 = vsyncadd [#allocation3], 0
      %s25 = sshll.u32 %s0, 4
      %s26 = int_to_ptr.hbm [resolvable:$true] %s25
      %s27 = sshll.u32 [#allocation2], 4
      %s28 = int_to_ptr.vmem [resolvable:$true] %s27
      %30 = dma.hbm_to_vmem [thread:$0]  %s26, 128, %s28, [#allocation3]
    $region5: #{actor_forward.1} parent=1 // pred_fallthru
      _
    // Predicated region
    $region6: #{actor_forward.1} parent=1 // pred_check
      _
    $region7: #{actor_forward.1} parent=1 // pred_check_branch
      %32 = sbr.rel (0) target = $region9
    $region8: #{actor_forward.1} parent=1 // pred_region
      %34 = vsyncadd [#allocation6], 0
      %s35 = sshll.u32 %s1, 4
      %s36 = int_to_ptr.hbm [resolvable:$true] %s35
      %s37 = sshll.u32 [#allocation5], 4
      %s38 = int_to_ptr.vmem [resolvable:$true] %s37
      %43 = dma.hbm_to_vmem [thread:$0]  %s36, 256, %s38, [#allocation6], 64, 64, 4
    $region9: #{actor_forward.1} parent=1 // pred_fallthru
      _
    // Predicated region
    $region10: #{actor_forward.1} parent=1 // pred_check
      _
    $region11: #{actor_forward.1} parent=1 // pred_check_branch
      %45 = sbr.rel (0) target = $region13
    $region12: #{actor_forward.1} parent=1 // pred_region
      _
    $region13: #{actor_forward.1} parent=1 // pred_fallthru
      _
    // Predicated region
    $region14: #{actor_forward.1} parent=1 // pred_check
      _
    $region15: #{actor_forward.1} parent=1 // pred_check_branch
      %47 = sbr.rel (0) target = $region17
    $region16: #{actor_forward.1} parent=1 // pred_region
      %49 = vsyncadd [#allocation6], 0
      %s50 = sshll.u32 %s3, 4
      %s51 = int_to_ptr.hbm [resolvable:$true] %s50
      %s52 = sshll.u32 [#allocation7], 4
      %s53 = int_to_ptr.vmem [resolvable:$true] %s52
      %58 = dma.hbm_to_vmem [thread:$0]  %s51, 1024, %s53, [#allocation6], 64, 64, 4
    $region17: #{actor_forward.1} parent=1 // pred_fallthru
      _
    // Predicated region
    $region18: #{actor_forward.1} parent=1 // pred_check
      _
    $region19: #{actor_forward.1} parent=1 // pred_check_branch
      %60 = sbr.rel (0) target = $region21
    $region20: #{actor_forward.1} parent=1 // pred_region
      _
    $region21: #{actor_forward.1} parent=1 // pred_fallthru
      _
    // Predicated region
    $region22: #{actor_forward.1} parent=1 // pred_check
      _
    $region23: #{actor_forward.1} parent=1 // pred_check_branch
      %62 = sbr.rel (0) target = $region25
    $region24: #{actor_forward.1} parent=1 // pred_region
      %64 = vsyncadd [#allocation9], 0
      %s65 = sshll.u32 %s5, 4
      %s66 = int_to_ptr.hbm [resolvable:$true] %s65
      %s67 = sshll.u32 [#allocation8], 4
      %s68 = int_to_ptr.vmem [resolvable:$true] %s67
      %73 = dma.hbm_to_vmem [thread:$0]  %s66, 1024, %s68, [#allocation9], 64, 64, 4
    $region25: #{actor_forward.1} parent=1 // pred_fallthru
      _
    // Predicated region
    $region26: #{actor_forward.1} parent=1 // pred_check
      _
    $region27: #{actor_forward.1} parent=1 // pred_check_branch
      %75 = sbr.rel (0) target = $region29
    $region28: #{actor_forward.1} parent=1 // pred_region
      _
    $region29: #{actor_forward.1} parent=1 // pred_fallthru
      _
    // Predicated region
    $region30: #{actor_forward.1} parent=1 // pred_check
      _
    $region31: #{actor_forward.1} parent=1 // pred_check_branch
      %77 = sbr.rel (0) target = $region33
    $region32: #{actor_forward.1} parent=1 // pred_region
      %79 = vsyncadd [#allocation9], 0
      %s81 = sshll.u32 %s7, 4
      %s82 = int_to_ptr.hbm [resolvable:$true] %s81
      %s83 = sshll.u32 [#allocation10], 4
      %s84 = int_to_ptr.vmem [resolvable:$true] %s83
      %86 = dma.hbm_to_vmem [thread:$0]  %s82, 128, %s84, [#allocation9]
    $region33: #{actor_forward.1} parent=1 // pred_fallthru
      _
    // Predicated region
    $region34: #{actor_forward.1} parent=1 // pred_check
      _
    $region35: #{actor_forward.1} parent=1 // pred_check_branch
      %88 = sbr.rel (0) target = $region37
    $region36: #{actor_forward.1} parent=1 // pred_region
      %90 = dma.done [#allocation3], 128
    $region37: #{actor_forward.1} parent=1 // pred_fallthru
      _
    // Predicated region
    $region38: #{actor_forward.1} parent=1 // pred_check
      _
    $region39: #{actor_forward.1} parent=1 // pred_check_branch
      %92 = sbr.rel (0) target = $region41
    $region40: #{actor_forward.1} parent=1 // pred_region
      %94 = dma.done [#allocation6], 256
    $region41: #{actor_forward.1} parent=1 // pred_fallthru
      _
    // Predicated region
    $region42: #{actor_forward.1} parent=1 // pred_check
      _
    $region43: #{actor_forward.1} parent=1 // pred_check_branch
      %96 = sbr.rel (0) target = $region45
    $region44: #{actor_forward.1} parent=1 // pred_region
      %98 = dma.done [#allocation6], 1024
    $region45: #{actor_forward.1} parent=1 // pred_fallthru
      _
    // Predicated region
    $region46: #{actor_forward.1} parent=1 // pred_check
      _
    $region47: #{actor_forward.1} parent=1 // pred_check_branch
      %100 = sbr.rel (0) target = $region49
    $region48: #{actor_forward.1} parent=1 // pred_region
      %102 = dma.done [#allocation9], 1024
    $region49: #{actor_forward.1} parent=1 // pred_fallthru
      _
    // Predicated region
    $region50: #{actor_forward.1} parent=1 // pred_check
      _
    $region51: #{actor_forward.1} parent=1 // pred_check_branch
      %104 = sbr.rel (0) target = $region53
    $region52: #{actor_forward.1} parent=1 // pred_region
      %106 = dma.done [#allocation9], 128
    $region53: #{actor_forward.1} parent=1 // pred_fallthru
      _
    %v108 = vld [vmem:[#allocation2] sm:$0xff]
    %v109 = vpack.c.bf16 %v108, %v108
    %v110 = vld [vmem:[#allocation5] sm:$0xf]
    %v111 = vld [vmem:[#allocation5 + $0x4] sm:$0xf]
    %v112 = vld [vmem:[#allocation5 + $0x8] sm:$0xf]
    %v113 = vld [vmem:[#allocation5 + $0xc] sm:$0xf]
    %v114 = vld [vmem:[%s2] sm:$0x1]
    %v116 = vperm.slane %v114, 0
    %v122 = vunpack.c.l.b16 %v110
    %v123 = vunpack.c.l.b16 %v111
    %v124 = vunpack.c.l.b16 %v112
    %v125 = vunpack.c.l.b16 %v113
    %v126 = vpack.c.b16 %v123, %v122
    %v127 = vpack.c.b16 %v125, %v124
    %vm130 = vcmask 261120
    %v132 = vsel %vm130, %v109, 0
    %134 = vmatpush.bf16.msra.mxu0 0
    %135 = vmatpush.bf16.msra.mxu0 0
    %136 = vmatpush.bf16.msra.mxu0 0
    %137 = vmatpush.bf16.msra.mxu0 0
    %138 = vmatpush.bf16.msra.mxu0 0
    %139 = vmatpush.bf16.msra.mxu0 0
    %140 = vmatpush.bf16.msra.mxu0 %v127
    %141 = vmatpush.bf16.msra.mxu0 %v126
    %142 = vmatmul.bf16.gmra.mxu0 %v132
    %v143 = vpop.f32.mrf.mxu0
    %v144 = vadd.f32 %v116, %v143
    %v145 = vpop.f32.mrf.mxu0
    %146 = vdwg.mxu0
    %v147 = vmax.f32 %v144, 0.0
    %v148 = vpack.c.bf16 %v147, %v147
    %v149 = vld [vmem:[#allocation7] sm:$0xf]
    %v150 = vld [vmem:[#allocation7 + $0x4] sm:$0xf]
    %v151 = vld [vmem:[#allocation7 + $0x8] sm:$0xf]
    %v152 = vld [vmem:[#allocation7 + $0xc] sm:$0xf]
    %v153 = vld [vmem:[#allocation7 + $0x10] sm:$0xf]
    %v154 = vld [vmem:[#allocation7 + $0x14] sm:$0xf]
    %v155 = vld [vmem:[#allocation7 + $0x18] sm:$0xf]
    %v156 = vld [vmem:[#allocation7 + $0x1c] sm:$0xf]
    %v157 = vld [vmem:[#allocation7 + $0x20] sm:$0xf]
    %v158 = vld [vmem:[#allocation7 + $0x24] sm:$0xf]
    %v159 = vld [vmem:[#allocation7 + $0x28] sm:$0xf]
    %v160 = vld [vmem:[#allocation7 + $0x2c] sm:$0xf]
    %v161 = vld [vmem:[#allocation7 + $0x30] sm:$0xf]
    %v162 = vld [vmem:[#allocation7 + $0x34] sm:$0xf]
    %v163 = vld [vmem:[#allocation7 + $0x38] sm:$0xf]
    %v164 = vld [vmem:[#allocation7 + $0x3c] sm:$0xf]
    %v165 = vld [vmem:[%s4] sm:$0x1]
    %v167 = vperm.slane %v165, 0
    %v185 = vunpack.c.l.b16 %v149
    %v186 = vunpack.c.l.b16 %v150
    %v187 = vunpack.c.l.b16 %v151
    %v188 = vunpack.c.l.b16 %v152
    %v189 = vunpack.c.l.b16 %v153
    %v190 = vunpack.c.l.b16 %v154
    %v191 = vunpack.c.l.b16 %v155
    %v192 = vunpack.c.l.b16 %v156
    %v193 = vunpack.c.l.b16 %v157
    %v194 = vunpack.c.l.b16 %v158
    %v195 = vunpack.c.l.b16 %v159
    %v196 = vunpack.c.l.b16 %v160
    %v197 = vunpack.c.l.b16 %v161
    %v198 = vunpack.c.l.b16 %v162
    %v199 = vunpack.c.l.b16 %v163
    %v200 = vunpack.c.l.b16 %v164
    %v201 = vpack.c.b16 %v186, %v185
    %v202 = vpack.c.b16 %v188, %v187
    %v203 = vpack.c.b16 %v190, %v189
    %v204 = vpack.c.b16 %v192, %v191
    %v205 = vpack.c.b16 %v194, %v193
    %v206 = vpack.c.b16 %v196, %v195
    %v207 = vpack.c.b16 %v198, %v197
    %v208 = vpack.c.b16 %v200, %v199
    %217 = vmatpush.bf16.msra.mxu0 %v208
    %218 = vmatpush.bf16.msra.mxu0 %v207
    %219 = vmatpush.bf16.msra.mxu0 %v206
    %220 = vmatpush.bf16.msra.mxu0 %v205
    %221 = vmatpush.bf16.msra.mxu0 %v204
    %222 = vmatpush.bf16.msra.mxu0 %v203
    %223 = vmatpush.bf16.msra.mxu0 %v202
    %224 = vmatpush.bf16.msra.mxu0 %v201
    %225 = vmatmul.bf16.gmra.mxu0 %v148
    %v226 = vpop.f32.mrf.mxu0
    %v227 = vadd.f32 %v167, %v226
    %v228 = vpop.f32.mrf.mxu0
    %229 = vdwg.mxu0
    %v230 = vmax.f32 %v227, 0.0
    %v231 = vpack.c.bf16 %v230, %v230
    %v232 = vld [vmem:[#allocation8] sm:$0xf]
    %v233 = vld [vmem:[#allocation8 + $0x4] sm:$0xf]
    %v234 = vld [vmem:[#allocation8 + $0x8] sm:$0xf]
    %v235 = vld [vmem:[#allocation8 + $0xc] sm:$0xf]
    %v236 = vld [vmem:[#allocation8 + $0x10] sm:$0xf]
    %v237 = vld [vmem:[#allocation8 + $0x14] sm:$0xf]
    %v238 = vld [vmem:[#allocation8 + $0x18] sm:$0xf]
    %v239 = vld [vmem:[#allocation8 + $0x1c] sm:$0xf]
    %v240 = vld [vmem:[#allocation8 + $0x20] sm:$0xf]
    %v241 = vld [vmem:[#allocation8 + $0x24] sm:$0xf]
    %v242 = vld [vmem:[#allocation8 + $0x28] sm:$0xf]
    %v243 = vld [vmem:[#allocation8 + $0x2c] sm:$0xf]
    %v244 = vld [vmem:[#allocation8 + $0x30] sm:$0xf]
    %v245 = vld [vmem:[#allocation8 + $0x34] sm:$0xf]
    %v246 = vld [vmem:[#allocation8 + $0x38] sm:$0xf]
    %v247 = vld [vmem:[#allocation8 + $0x3c] sm:$0xf]
    %v264 = vunpack.c.l.b16 %v232
    %v265 = vunpack.c.l.b16 %v233
    %v266 = vunpack.c.l.b16 %v234
    %v267 = vunpack.c.l.b16 %v235
    %v268 = vunpack.c.l.b16 %v236
    %v269 = vunpack.c.l.b16 %v237
    %v270 = vunpack.c.l.b16 %v238
    %v271 = vunpack.c.l.b16 %v239
    %v272 = vunpack.c.l.b16 %v240
    %v273 = vunpack.c.l.b16 %v241
    %v274 = vunpack.c.l.b16 %v242
    %v275 = vunpack.c.l.b16 %v243
    %v276 = vunpack.c.l.b16 %v244
    %v277 = vunpack.c.l.b16 %v245
    %v278 = vunpack.c.l.b16 %v246
    %v279 = vunpack.c.l.b16 %v247
    %v280 = vpack.c.b16 %v265, %v264
    %v281 = vpack.c.b16 %v267, %v266
    %v282 = vpack.c.b16 %v269, %v268
    %v283 = vpack.c.b16 %v271, %v270
    %v284 = vpack.c.b16 %v273, %v272
    %v285 = vpack.c.b16 %v275, %v274
    %v286 = vpack.c.b16 %v277, %v276
    %v287 = vpack.c.b16 %v279, %v278
    %296 = vmatpush.bf16.msra.mxu0 %v287
    %297 = vmatpush.bf16.msra.mxu0 %v286
    %298 = vmatpush.bf16.msra.mxu0 %v285
    %299 = vmatpush.bf16.msra.mxu0 %v284
    %300 = vmatpush.bf16.msra.mxu0 %v283
    %301 = vmatpush.bf16.msra.mxu0 %v282
    %302 = vmatpush.bf16.msra.mxu0 %v281
    %303 = vmatpush.bf16.msra.mxu0 %v280
    %304 = vmatmul.bf16.gmra.mxu0 %v231
    %v305 = vpop.f32.mrf.mxu0
    %v306 = vadd.f32 0.0, %v305
    %v307 = vpop.f32.mrf.mxu0
    %308 = vdwg.mxu0
    %v309 = vld [vmem:[%s6] sm:$0x1]
    %v311 = vperm.slane %v309, 0
    %v313 = vadd.f32 %v306, %v311
    %v314 = vld [vmem:[#allocation10] sm:$0xff]
    %v315 = vadd.f32 %v314, 1e-10
    %v316 = vlog2.pop %v315
    %v317 = vmul.f32 %v316, 0.6931472
    %v318 = vadd.f32 %v313, %v317
    %vm319 = vcmask 64512
    %v320 = vsel %vm319, %v318, -inf
    %321 = vmax.xlane.f32.xlu0 %v320
    %v322 = vpop.xlane.xlu0 %321
    %v323 = vsub.f32 %v318, %v322
    %v324 = vmul.f32 %v323, 1.442695
    %v325 = vpow.pop %v324
    %v326 = vsel %vm319, %v325, 0.0
    %327 = vadd.xlane.f32.xlu0 %v326
    %v328 = vpop.xlane.xlu0 %327
    %v329 = vlog2.pop %v328
    %v330 = vmul.f32 %v329, 0.6931472
    %v331 = vadd.f32 %v322, %v330
    %332 = vst.msk [vmem:[#allocation11] sm:$0xff] %vm319, %v318
    %v333 = vsub.f32 %v318, %v331
    %334 = vst.msk [vmem:[#allocation12] sm:$0xff] %vm319, %v333
    // Predicated region
    $region54: #{actor_forward.1} parent=1 // pred_check
      _
    $region55: #{actor_forward.1} parent=1 // pred_check_branch
      %336 = sbr.rel (0) target = $region57
    $region56: #{actor_forward.1} parent=1 // pred_region
      %338 = vsyncadd [#allocation4], 0
      %s340 = sshll.u32 [#allocation11], 4
      %s341 = int_to_ptr.vmem [resolvable:$true] %s340
      %s342 = sshll.u32 %s8, 4
      %s343 = int_to_ptr.hbm [resolvable:$true] %s342
      %345 = dma.vmem_to_hbm [thread:$0]  %s341, 128, %s343, [#allocation4]
    $region57: #{actor_forward.1} parent=1 // pred_fallthru
      _
    // Predicated region
    $region58: #{actor_forward.1} parent=1 // pred_check
      _
    $region59: #{actor_forward.1} parent=1 // pred_check_branch
      %347 = sbr.rel (0) target = $region61
    $region60: #{actor_forward.1} parent=1 // pred_region
      %349 = vsyncadd [#allocation13], 0
      %s351 = sshll.u32 [#allocation12], 4
      %s352 = int_to_ptr.vmem [resolvable:$true] %s351
      %s353 = sshll.u32 %s9, 4
      %s354 = int_to_ptr.hbm [resolvable:$true] %s353
      %356 = dma.vmem_to_hbm [thread:$0]  %s352, 128, %s354, [#allocation13]
    $region61: #{actor_forward.1} parent=1 // pred_fallthru
      _
    // Predicated region
    $region62: #{actor_forward.1} parent=1 // pred_check
      _
    $region63: #{actor_forward.1} parent=1 // pred_check_branch
      %358 = sbr.rel (0) target = $region65
    $region64: #{actor_forward.1} parent=1 // pred_region
      %360 = dma.done [#allocation4], 128
    $region65: #{actor_forward.1} parent=1 // pred_fallthru
      _
    // Predicated region
    $region66: #{actor_forward.1} parent=1 // pred_check
      _
    $region67: #{actor_forward.1} parent=1 // pred_check_branch
      %362 = sbr.rel (0) target = $region69
    $region68: #{actor_forward.1} parent=1 // pred_region
      %364 = dma.done [#allocation13], 128
    $region69: #{actor_forward.1} parent=1 // pred_fallthru
      _
    %365 = vsyncpa [#allocation3], 1
    %366 = vsyncpa [#allocation6], 1
    %367 = vsyncpa [#allocation9], 1
    %368 = vsyncpa [#allocation4], 1
    %369 = vsyncpa [#allocation13], 1

</llo_original>
